<compile_context>
chip_gen: v5e
topology: v5e:2x2
jax: 0.10.0
libtpu: 0.0.40
codegen_flags: <defaults>
</compile_context>

<pallas_src>
import functools

import jax
import jax.numpy as jnp
from jax.experimental import pallas as pl
from jax.experimental.pallas import tpu as pltpu


LANE = 128  # TPU lane width; one packed 128-lane band per layer


# ---------------------------------------------------------------------------
# Fused Pallas kernel: whole 5-layer MLP for one feature-major batch tile
# ---------------------------------------------------------------------------
def dnn4_cord_kernel(x_ref, wb_ref, out_ref, *, layer_dims):
    """x_ref: (in_f, TB); wb_ref: (R, 128*L) packed weights+biases; out_ref: (2, TB).

    Packed layout per layer i (band of 128 lanes at offset i*128):
      band[:out_i, :in_i]  = W_i   (natural (Out, In) layout)
      band[:out_i,  in_i]  = b_i
    """
    n = len(layer_dims)
    z = x_ref[...].astype(jnp.float32)                        # (in_f, TB), batch on lanes
    for i, (in_i, out_i) in enumerate(layer_dims):
        off = i * LANE
        w = wb_ref[0:out_i, off:off + in_i]                   # (out_i, in_i)
        b = wb_ref[0:out_i, off + in_i:off + in_i + 1]        # (out_i, 1)
        z = jnp.dot(w, z, preferred_element_type=jnp.float32) + b
        if i < n - 1:
            z = jnp.maximum(z, 0.0)                           # nn.ReLU
        else:
            z = jax.nn.sigmoid(z)                             # nn.Sigmoid (EUP)
    out_ref[...] = z.astype(out_ref.dtype)                    # lane-dense store


# ---------------------------------------------------------------------------
# Host-side packing of all layer weights/biases into one tiny resident block
# ---------------------------------------------------------------------------
def _pack_params(params):
    rows = max(p["w"].shape[0] for p in params)
    rows = 8 * pl.cdiv(rows, 8)                               # sublane-align
    cols = LANE * len(params)
    wb = jnp.zeros((rows, cols), jnp.float32)
    layer_dims = []
    for i, p in enumerate(params):
        w, b = p["w"], p["b"]                                 # (out, in), (out,)
        out_i, in_i = w.shape
        off = i * LANE
        wb = wb.at[:out_i, off:off + in_i].set(w)
        wb = wb.at[:out_i, off + in_i].set(b)
        layer_dims.append((in_i, out_i))
    return wb, tuple(layer_dims)


# ---------------------------------------------------------------------------
# Wrapper: single fused pallas_call over a (parallel) batch grid
# ---------------------------------------------------------------------------
def dnn4_cord_apply(params, x, *, tile_b=32768):
    b, in_f = x.shape
    out_f = params[-1]["w"].shape[0]
    wb, layer_dims = _pack_params(params)

    # Batch tile on the lane dim: full array for small batches; otherwise a
    # 128-aligned tile with >= 2 grid steps so both v7x TensorCores get work.
    if b <= 2 * LANE:
        tb = b
    else:
        b_lane = LANE * pl.cdiv(b, LANE)
        tb = min(tile_b, max(LANE, (b_lane // 2 // LANE) * LANE))
    b_pad = tb * pl.cdiv(b, tb)

    # Feature-major presentation (layout plumbing only); pad fuses with it.
    xt = x.T
    if b_pad != b:
        xt = jnp.pad(xt, ((0, 0), (0, b_pad - b)))

    out = pl.pallas_call(
        functools.partial(dnn4_cord_kernel, layer_dims=layer_dims),
        out_shape=jax.ShapeDtypeStruct((out_f, b_pad), jnp.float32),
        grid=(b_pad // tb,),
        in_specs=[
            pl.BlockSpec((in_f, tb), lambda i: (0, i)),       # activations
            pl.BlockSpec(wb.shape, lambda i: (0, 0)),         # resident weights
        ],
        out_specs=pl.BlockSpec((out_f, tb), lambda i: (0, i)),
        compiler_params=pltpu.CompilerParams(
            dimension_semantics=("parallel",)),
    )(xt, wb)
    return out[:, :b].T                                       # (B, 2)


# ---------------------------------------------------------------------------
# Parameter construction (deterministic synthetic; shapes follow __init__)
# ---------------------------------------------------------------------------
def init_linear_params(key, in_f, out_f):
    kw, kb = jax.random.split(key)
    bound = 1.0 / jnp.sqrt(jnp.float32(in_f))
    w = jax.random.uniform(kw, (out_f, in_f), jnp.float32, -bound, bound)
    b = jax.random.uniform(kb, (out_f,), jnp.float32, -bound, bound)
    return {"w": w, "b": b}                                   # natural (Out, In)


def init_dnn4_cord(key, in_channels, hidden_dims):
    # fclayer1..4: in->h0->h1->h2->h3 (Linear+ReLU), fclayer5: h3->2 (Linear+Sigmoid)
    dims = [in_channels] + list(hidden_dims) + [2]
    keys = jax.random.split(key, len(dims) - 1)
    return [init_linear_params(keys[i], dims[i], dims[i + 1])
            for i in range(len(dims) - 1)]


def dnn4_cord_forward(params, inputs, **kwargs):
    # mirrors DNN4_cord.forward: consumes inputs[0], returns [z, inputs]
    z = dnn4_cord_apply(params, inputs[0], **kwargs)
    return [z, inputs]


# ---------------------------------------------------------------------------
# Pure-JAX reference (correctness check)
# ---------------------------------------------------------------------------
def dnn4_cord_ref(params, x):
    z = x
    n = len(params)
    for i, p in enumerate(params):
        z = z @ p["w"].T + p["b"]
        z = jnp.maximum(z, 0.0) if i < n - 1 else jax.nn.sigmoid(z)
    return z


# ---------------------------------------------------------------------------
if __name__ == "__main__":
    key = jax.random.PRNGKey(0)
    k_par, k_x, k_t = jax.random.split(key, 3)

    in_channels = 4
    hidden_dims = [32, 24, 16, 8]           # module needs 4 hidden dims (uses hidden_dims[3])
    batch = 8

    params = init_dnn4_cord(k_par, in_channels, hidden_dims)
    x = jax.random.normal(k_x, (batch, in_channels), jnp.float32)
    target = jax.random.normal(k_t, (batch, 2), jnp.float32)   # input[1], used only by loss

    out = dnn4_cord_forward(params, [x, target])
    z = jax.block_until_ready(out[0])                          # (batch, 2), sigmoid-activated

    z_ref = dnn4_cord_ref(params, x)
    assert z.shape == (batch, 2)
    assert jnp.allclose(z, z_ref, atol=1e-5, rtol=1e-5), "Pallas output mismatch vs reference"

    print("KERNEL_OK")
</pallas_src>

<mosaic_0001>
module attributes {stable_mosaic.version = 11 : i64} {
  func.func @dnn4_cord_kernel(%arg0: i32, %arg1: memref<4x8xf32, #tpu.memory_space<vmem>>, %arg2: memref<32x640xf32, #tpu.memory_space<vmem>>, %arg3: memref<2x8xf32, #tpu.memory_space<vmem>>) attributes {dimension_semantics = [#tpu.dimension_semantics<parallel>], iteration_bounds = array<i64: 1>, scalar_prefetch = 0 : i64, scratch_operands = 0 : i64, tpu.core_type = #tpu.core_type<tc>, window_params = [{transform_indices = @transform_0, window_bounds = array<i64: 4, 8>}, {pipeline_mode = #tpu.pipeline_mode<synchronous>, transform_indices = @transform_1, window_bounds = array<i64: 32, 640>}, {transform_indices = @transform_2, window_bounds = array<i64: 2, 8>}]} {
    %c0 = arith.constant 0 : index
    %c0_0 = arith.constant 0 : index
    %0 = vector.load %arg1[%c0, %c0_0] : memref<4x8xf32, #tpu.memory_space<vmem>>, vector<4x8xf32>
    %c0_1 = arith.constant 0 : index
    %c0_2 = arith.constant 0 : index
    %1 = vector.load %arg2[%c0_1, %c0_2] : memref<32x640xf32, #tpu.memory_space<vmem>>, vector<32x4xf32>
    %c0_3 = arith.constant 0 : index
    %c4 = arith.constant 4 : index
    %2 = vector.load %arg2[%c0_3, %c4] : memref<32x640xf32, #tpu.memory_space<vmem>>, vector<32x1xf32>
    %cst = arith.constant dense<0.000000e+00> : vector<32x8xf32>
    %3 = tpu.matmul %1, %0, %cst {dimension_numbers = #tpu.dot_dimension_numbers<[1], [0], [0], [1], [0, 0, 1, 1], [], []>} : vector<32x4xf32>, vector<4x8xf32>, vector<32x8xf32> -> vector<32x8xf32>
    %4 = vector.broadcast %2 : vector<32x1xf32> to vector<32x8xf32>
    %5 = arith.addf %3, %4 : vector<32x8xf32>
    %cst_4 = arith.constant 0.000000e+00 : f32
    %6 = vector.broadcast %cst_4 : f32 to vector<32x8xf32>
    %7 = arith.maximumf %5, %6 : vector<32x8xf32>
    %c0_5 = arith.constant 0 : index
    %c128 = arith.constant 128 : index
    %8 = vector.load %arg2[%c0_5, %c128] : memref<32x640xf32, #tpu.memory_space<vmem>>, vector<24x32xf32>
    %c0_6 = arith.constant 0 : index
    %c160 = arith.constant 160 : index
    %9 = vector.load %arg2[%c0_6, %c160] : memref<32x640xf32, #tpu.memory_space<vmem>>, vector<24x1xf32>
    %cst_7 = arith.constant dense<0.000000e+00> : vector<24x8xf32>
    %10 = tpu.matmul %8, %7, %cst_7 {dimension_numbers = #tpu.dot_dimension_numbers<[1], [0], [0], [1], [0, 0, 1, 1], [], []>} : vector<24x32xf32>, vector<32x8xf32>, vector<24x8xf32> -> vector<24x8xf32>
    %11 = vector.broadcast %9 : vector<24x1xf32> to vector<24x8xf32>
    %12 = arith.addf %10, %11 : vector<24x8xf32>
    %cst_8 = arith.constant 0.000000e+00 : f32
    %13 = vector.broadcast %cst_8 : f32 to vector<24x8xf32>
    %14 = arith.maximumf %12, %13 : vector<24x8xf32>
    %c0_9 = arith.constant 0 : index
    %c256 = arith.constant 256 : index
    %15 = vector.load %arg2[%c0_9, %c256] : memref<32x640xf32, #tpu.memory_space<vmem>>, vector<16x24xf32>
    %c0_10 = arith.constant 0 : index
    %c280 = arith.constant 280 : index
    %16 = vector.load %arg2[%c0_10, %c280] : memref<32x640xf32, #tpu.memory_space<vmem>>, vector<16x1xf32>
    %cst_11 = arith.constant dense<0.000000e+00> : vector<16x8xf32>
    %17 = tpu.matmul %15, %14, %cst_11 {dimension_numbers = #tpu.dot_dimension_numbers<[1], [0], [0], [1], [0, 0, 1, 1], [], []>} : vector<16x24xf32>, vector<24x8xf32>, vector<16x8xf32> -> vector<16x8xf32>
    %18 = vector.broadcast %16 : vector<16x1xf32> to vector<16x8xf32>
    %19 = arith.addf %17, %18 : vector<16x8xf32>
    %cst_12 = arith.constant 0.000000e+00 : f32
    %20 = vector.broadcast %cst_12 : f32 to vector<16x8xf32>
    %21 = arith.maximumf %19, %20 : vector<16x8xf32>
    %c0_13 = arith.constant 0 : index
    %c384 = arith.constant 384 : index
    %22 = vector.load %arg2[%c0_13, %c384] : memref<32x640xf32, #tpu.memory_space<vmem>>, vector<8x16xf32>
    %c0_14 = arith.constant 0 : index
    %c400 = arith.constant 400 : index
    %23 = vector.load %arg2[%c0_14, %c400] : memref<32x640xf32, #tpu.memory_space<vmem>>, vector<8x1xf32>
    %cst_15 = arith.constant dense<0.000000e+00> : vector<8x8xf32>
    %24 = tpu.matmul %22, %21, %cst_15 {dimension_numbers = #tpu.dot_dimension_numbers<[1], [0], [0], [1], [0, 0, 1, 1], [], []>} : vector<8x16xf32>, vector<16x8xf32>, vector<8x8xf32> -> vector<8x8xf32>
    %25 = vector.broadcast %23 : vector<8x1xf32> to vector<8x8xf32>
    %26 = arith.addf %24, %25 : vector<8x8xf32>
    %cst_16 = arith.constant 0.000000e+00 : f32
    %27 = vector.broadcast %cst_16 : f32 to vector<8x8xf32>
    %28 = arith.maximumf %26, %27 : vector<8x8xf32>
    %c0_17 = arith.constant 0 : index
    %c512 = arith.constant 512 : index
    %29 = vector.load %arg2[%c0_17, %c512] : memref<32x640xf32, #tpu.memory_space<vmem>>, vector<2x8xf32>
    %c0_18 = arith.constant 0 : index
    %c520 = arith.constant 520 : index
    %30 = vector.load %arg2[%c0_18, %c520] : memref<32x640xf32, #tpu.memory_space<vmem>>, vector<2x1xf32>
    %cst_19 = arith.constant dense<0.000000e+00> : vector<2x8xf32>
    %31 = tpu.matmul %29, %28, %cst_19 {dimension_numbers = #tpu.dot_dimension_numbers<[1], [0], [0], [1], [0, 0, 1, 1], [], []>} : vector<2x8xf32>, vector<8x8xf32>, vector<2x8xf32> -> vector<2x8xf32>
    %32 = vector.broadcast %30 : vector<2x1xf32> to vector<2x8xf32>
    %33 = arith.addf %31, %32 : vector<2x8xf32>
    %34 = arith.negf %33 : vector<2x8xf32>
    %35 = math.exp %34 : vector<2x8xf32>
    %cst_20 = arith.constant 1.000000e+00 : f32
    %36 = vector.broadcast %cst_20 : f32 to vector<2x8xf32>
    %37 = arith.addf %36, %35 : vector<2x8xf32>
    %38 = arith.divf %36, %37 : vector<2x8xf32>
    %c0_21 = arith.constant 0 : index
    %c0_22 = arith.constant 0 : index
    %39 = vector.load %arg3[%c0_21, %c0_22] : memref<2x8xf32, #tpu.memory_space<vmem>>, vector<2x8xf32>
    tpu.vector_store %arg3[%c0_21, %c0_22], %38 {strides = array<i32>} : memref<2x8xf32, #tpu.memory_space<vmem>>, vector<2x8xf32>,
    return
  }
  func.func @transform_0(%arg0: i32) -> (i32, i32) {
    %c0_i32 = arith.constant 0 : i32
    %c0_i32_0 = arith.constant 0 : i32
    return %c0_i32, %arg0 : i32, i32
  }
  func.func @transform_1(%arg0: i32) -> (i32, i32) {
    %c0_i32 = arith.constant 0 : i32
    %c0_i32_0 = arith.constant 0 : i32
    %c0_i32_1 = arith.constant 0 : i32
    return %c0_i32, %c0_i32_0 : i32, i32
  }
  func.func @transform_2(%arg0: i32) -> (i32, i32) {
    %c0_i32 = arith.constant 0 : i32
    %c0_i32_0 = arith.constant 0 : i32
    return %c0_i32, %arg0 : i32, i32
  }
}

</mosaic_0001>

<llo_original>
// kernel: tpu_custom_call.1
$region0: #{tpu_custom_call.1}
  #allocation0 [shape = 'u32[]', space=smem, size = 0x4, offset = 0x4, fixed_abs, tag = 'smem constant byte address 0x4 - core index']
  #allocation1 [shape = 'u32[72,128]{1,0:T(1,128)}', space=vmem, size = 0x9000, scoped, tag = 'internal scratch']
  %s0 = inlined_call_operand.hbm [shape: f32[4,8], index: 0, kind: input, shape index: {}]
  %s1 = inlined_call_operand.hbm [shape: f32[32,640], index: 1, kind: input, shape index: {}]
  %s2 = inlined_call_operand.hbm [shape: f32[2,8], index: 2, kind: output, shape index: {}]
  %s3 = sld [smem:[#allocation0]]
  $region26: #{tpu_custom_call.1} parent=0
    _
  %s5 = ssub.s32 1, %s3
  %s6 = scalar_select 0, %s5, %s3
  $region1: #{tpu_custom_call.1} parent=0
    #allocation2 [shape = 'u8[2048]{0}', space=vmem, size = 0x800, scoped, tag = 'input window, operand 0, single buffered']
    #allocation3 [shape = 's32[1]{0}', space=sflag, size = 0x4, scoped, tag = 'scoped memory for tpu_custom_call.1']
    #allocation4 [shape = 's32[1]{0}', space=sflag, size = 0x4, scoped, tag = 'scoped memory for tpu_custom_call.1']
    #allocation5 [shape = 'u8[81920]{0}', space=vmem, size = 0x14000, scoped, tag = 'input window, operand 1, single buffered']
    #allocation6 [shape = 's32[1]{0}', space=sflag, size = 0x4, scoped, tag = 'scoped memory for tpu_custom_call.1']
    #allocation7 [shape = 'u8[1024]{0}', space=vmem, size = 0x400, scoped, tag = 'output window, operand 0, single buffered']
    %7 = vsyncpa [#allocation3], 0
    %8 = vsyncpa [#allocation6], 0
    %9 = vsyncpa [#allocation4], 0
    // Predicated region
    $region2: #{tpu_custom_call.1} parent=1 // pred_check
      _
    $region3: #{tpu_custom_call.1} parent=1 // pred_check_branch
      %11 = sbr.rel (0) target = $region5
    $region4: #{tpu_custom_call.1} parent=1 // pred_region
      %13 = vsyncadd [#allocation3], 0
      %s15 = sshll.u32 %s0, 4
      %s16 = int_to_ptr.hbm [resolvable:$true] %s15
      %s17 = sshll.u32 [#allocation2], 4
      %s18 = int_to_ptr.vmem [resolvable:$true] %s17
      %20 = dma.hbm_to_vmem [thread:$0]  %s16, 64, %s18, [#allocation3]
    $region5: #{tpu_custom_call.1} parent=1 // pred_fallthru
      _
    // Predicated region
    $region6: #{tpu_custom_call.1} parent=1 // pred_check
      _
    $region7: #{tpu_custom_call.1} parent=1 // pred_check_branch
      %22 = sbr.rel (0) target = $region9
    $region8: #{tpu_custom_call.1} parent=1 // pred_region
      %24 = vsyncadd [#allocation6], 0
      %s25 = sshll.u32 %s1, 4
      %s26 = int_to_ptr.hbm [resolvable:$true] %s25
      %s27 = sshll.u32 [#allocation5], 4
      %s28 = int_to_ptr.vmem [resolvable:$true] %s27
      %33 = dma.hbm_to_vmem [thread:$0]  %s26, 2560, %s28, [#allocation6], 640, 640, 40
    $region9: #{tpu_custom_call.1} parent=1 // pred_fallthru
      _
    // Predicated region
    $region10: #{tpu_custom_call.1} parent=1 // pred_check
      _
    $region11: #{tpu_custom_call.1} parent=1 // pred_check_branch
      %35 = sbr.rel (0) target = $region13
    $region12: #{tpu_custom_call.1} parent=1 // pred_region
      %37 = dma.done [#allocation3], 64
    $region13: #{tpu_custom_call.1} parent=1 // pred_fallthru
      _
    // Predicated region
    $region14: #{tpu_custom_call.1} parent=1 // pred_check
      _
    $region15: #{tpu_custom_call.1} parent=1 // pred_check_branch
      %39 = sbr.rel (0) target = $region17
    $region16: #{tpu_custom_call.1} parent=1 // pred_region
      %41 = dma.done [#allocation6], 2560
    $region17: #{tpu_custom_call.1} parent=1 // pred_fallthru
      _
    %v42 = vld [vmem:[#allocation2] sm:$0xf]
    %v43 = vld [vmem:[#allocation5] sm:$0xff]
    %v44 = vld [vmem:[#allocation5 + $0x28] sm:$0xff]
    %v45 = vld [vmem:[#allocation5 + $0x50] sm:$0xff]
    %v46 = vld [vmem:[#allocation5 + $0x78] sm:$0xff]
    %48 = vset.pattern.permute.xlu0 4
    %49 = vperm.xlu0 %48, %v43
    %v50 = vpop.permute.xlu0 %49
    %53 = vset.pattern.permute.xlu0 4
    %54 = vperm.xlu0 %53, %v44
    %v55 = vpop.permute.xlu0 %54
    %58 = vset.pattern.permute.xlu0 4
    %59 = vperm.xlu0 %58, %v45
    %v60 = vpop.permute.xlu0 %59
    %63 = vset.pattern.permute.xlu0 4
    %64 = vperm.xlu0 %63, %v46
    %v65 = vpop.permute.xlu0 %64
    %vm67 = vcmask 31744
    %v68 = vsel %vm67, %v43, 0
    %v70 = vsel %vm67, %v44, 0
    %v72 = vsel %vm67, %v45, 0
    %v74 = vsel %vm67, %v46, 0
    %vm76 = vcmask 1043456
    %v78 = vsel %vm76, %v42, 0
    %80 = vmatpush.msra.mxu0 0.0
    %81 = vmatpush.msra.mxu0 0.0
    %82 = vmatpush.msra.mxu0 0.0
    %83 = vmatpush.msra.mxu0 0.0
    %84 = vmatpush.msra.mxu0 0.0
    %85 = vmatpush.msra.mxu0 0.0
    %86 = vmatpush.msra.mxu0 0.0
    %87 = vmatpush.msra.mxu0 0.0
    %88 = vmatpush.msra.mxu0 0.0
    %89 = vmatpush.msra.mxu0 0.0
    %90 = vmatpush.msra.mxu0 0.0
    %91 = vmatpush.msra.mxu0 0.0
    %92 = vmatpush.msra.mxu0 0.0
    %93 = vmatpush.msra.mxu0 0.0
    %94 = vmatpush.msra.mxu0 0.0
    %95 = vmatpush.msra.mxu0 %v78
    %96 = vmatmul.f32.gmra.mxu0 %v68
    %v97 = vpop.f32.mrf.mxu0
    %v98 = vadd.f32 %v50, %v97
    %99 = vmatmul.f32.gmra.mxu0 %v70
    %v100 = vpop.f32.mrf.mxu0
    %v101 = vadd.f32 %v55, %v100
    %102 = vmatmul.f32.gmra.mxu0 %v72
    %v103 = vpop.f32.mrf.mxu0
    %v104 = vadd.f32 %v60, %v103
    %105 = vmatmul.f32.gmra.mxu0 %v74
    %v106 = vpop.f32.mrf.mxu0
    %v107 = vadd.f32 %v65, %v106
    %108 = vdwg.mxu0
    %v109 = vmax.f32 %v98, 0.0
    %v110 = vmax.f32 %v101, 0.0
    %v111 = vmax.f32 %v104, 0.0
    %v112 = vmax.f32 %v107, 0.0
    %v113 = vld [vmem:[#allocation5 + $0x8] sm:$0xff]
    %v114 = vld [vmem:[#allocation5 + $0x30] sm:$0xff]
    %v115 = vld [vmem:[#allocation5 + $0x58] sm:$0xff]
    %117 = vset.pattern.permute.xlu0 32
    %118 = vperm.xlu0 %117, %v113
    %v119 = vpop.permute.xlu0 %118
    %122 = vset.pattern.permute.xlu0 32
    %123 = vperm.xlu0 %122, %v114
    %v124 = vpop.permute.xlu0 %123
    %127 = vset.pattern.permute.xlu0 32
    %128 = vperm.xlu0 %127, %v115
    %v129 = vpop.permute.xlu0 %128
    %vm131 = vcmask 261120
    %v132 = vsel %vm131, %v113, 0
    %v134 = vsel %vm131, %v114, 0
    %v136 = vsel %vm131, %v115, 0
    %138 = vmatpush.msra.mxu0 0.0
    %139 = vmatpush.msra.mxu0 0.0
    %140 = vmatpush.msra.mxu0 0.0
    %141 = vmatpush.msra.mxu0 0.0
    %142 = vmatpush.msra.mxu0 0.0
    %143 = vmatpush.msra.mxu0 0.0
    %144 = vmatpush.msra.mxu0 0.0
    %145 = vmatpush.msra.mxu0 0.0
    %146 = vmatpush.msra.mxu0 0.0
    %147 = vmatpush.msra.mxu0 0.0
    %148 = vmatpush.msra.mxu0 0.0
    %149 = vmatpush.msra.mxu0 0.0
    %150 = vmatpush.msra.mxu0 %v112
    %151 = vmatpush.msra.mxu0 %v111
    %152 = vmatpush.msra.mxu0 %v110
    %153 = vmatpush.msra.mxu0 %v109
    %154 = vmatmul.f32.gmra.mxu0 %v132
    %v155 = vpop.f32.mrf.mxu0
    %v156 = vadd.f32 %v119, %v155
    %157 = vmatmul.f32.gmra.mxu0 %v134
    %v158 = vpop.f32.mrf.mxu0
    %v159 = vadd.f32 %v124, %v158
    %160 = vmatmul.f32.gmra.mxu0 %v136
    %v161 = vpop.f32.mrf.mxu0
    %v162 = vadd.f32 %v129, %v161
    %163 = vdwg.mxu0
    %v164 = vmax.f32 %v156, 0.0
    %v165 = vmax.f32 %v159, 0.0
    %v166 = vmax.f32 %v162, 0.0
    %v167 = vld [vmem:[#allocation5 + $0x10] sm:$0xff]
    %v168 = vld [vmem:[#allocation5 + $0x38] sm:$0xff]
    %170 = vset.pattern.permute.xlu0 24
    %171 = vperm.xlu0 %170, %v167
    %v172 = vpop.permute.xlu0 %171
    %175 = vset.pattern.permute.xlu0 24
    %176 = vperm.xlu0 %175, %v168
    %v177 = vpop.permute.xlu0 %176
    %vm179 = vcmask 195584
    %v180 = vsel %vm179, %v167, 0
    %v182 = vsel %vm179, %v168, 0
    %184 = vmatpush.msra.mxu0 0.0
    %185 = vmatpush.msra.mxu0 0.0
    %186 = vmatpush.msra.mxu0 0.0
    %187 = vmatpush.msra.mxu0 0.0
    %188 = vmatpush.msra.mxu0 0.0
    %189 = vmatpush.msra.mxu0 0.0
    %190 = vmatpush.msra.mxu0 0.0
    %191 = vmatpush.msra.mxu0 0.0
    %192 = vmatpush.msra.mxu0 0.0
    %193 = vmatpush.msra.mxu0 0.0
    %194 = vmatpush.msra.mxu0 0.0
    %195 = vmatpush.msra.mxu0 0.0
    %196 = vmatpush.msra.mxu0 0.0
    %197 = vmatpush.msra.mxu0 %v166
    %198 = vmatpush.msra.mxu0 %v165
    %199 = vmatpush.msra.mxu0 %v164
    %200 = vmatmul.f32.gmra.mxu0 %v180
    %v201 = vpop.f32.mrf.mxu0
    %v202 = vadd.f32 %v172, %v201
    %203 = vmatmul.f32.gmra.mxu0 %v182
    %v204 = vpop.f32.mrf.mxu0
    %v205 = vadd.f32 %v177, %v204
    %206 = vdwg.mxu0
    %v207 = vmax.f32 %v202, 0.0
    %v208 = vmax.f32 %v205, 0.0
    %v209 = vld [vmem:[#allocation5 + $0x18] sm:$0xff]
    %211 = vset.pattern.permute.xlu0 16
    %212 = vperm.xlu0 %211, %v209
    %v213 = vpop.permute.xlu0 %212
    %vm215 = vcmask 130048
    %v216 = vsel %vm215, %v209, 0
    %218 = vmatpush.msra.mxu0 0.0
    %219 = vmatpush.msra.mxu0 0.0
    %220 = vmatpush.msra.mxu0 0.0
    %221 = vmatpush.msra.mxu0 0.0
    %222 = vmatpush.msra.mxu0 0.0
    %223 = vmatpush.msra.mxu0 0.0
    %224 = vmatpush.msra.mxu0 0.0
    %225 = vmatpush.msra.mxu0 0.0
    %226 = vmatpush.msra.mxu0 0.0
    %227 = vmatpush.msra.mxu0 0.0
    %228 = vmatpush.msra.mxu0 0.0
    %229 = vmatpush.msra.mxu0 0.0
    %230 = vmatpush.msra.mxu0 0.0
    %231 = vmatpush.msra.mxu0 0.0
    %232 = vmatpush.msra.mxu0 %v208
    %233 = vmatpush.msra.mxu0 %v207
    %234 = vmatmul.f32.gmra.mxu0 %v216
    %v235 = vpop.f32.mrf.mxu0
    %v236 = vadd.f32 %v213, %v235
    %237 = vdwg.mxu0
    %v238 = vmax.f32 %v236, 0.0
    %v239 = vld [vmem:[#allocation5 + $0x20] sm:$0x3]
    %241 = vset.pattern.permute.xlu0 8
    %242 = vperm.xlu0 %241, %v239
    %v243 = vpop.permute.xlu0 %242
    %vm245 = vcmask 64512
    %v246 = vsel %vm245, %v239, 0
    %248 = vmatpush.msra.mxu0 0.0
    %249 = vmatpush.msra.mxu0 0.0
    %250 = vmatpush.msra.mxu0 0.0
    %251 = vmatpush.msra.mxu0 0.0
    %252 = vmatpush.msra.mxu0 0.0
    %253 = vmatpush.msra.mxu0 0.0
    %254 = vmatpush.msra.mxu0 0.0
    %255 = vmatpush.msra.mxu0 0.0
    %256 = vmatpush.msra.mxu0 0.0
    %257 = vmatpush.msra.mxu0 0.0
    %258 = vmatpush.msra.mxu0 0.0
    %259 = vmatpush.msra.mxu0 0.0
    %260 = vmatpush.msra.mxu0 0.0
    %261 = vmatpush.msra.mxu0 0.0
    %262 = vmatpush.msra.mxu0 0.0
    %263 = vmatpush.msra.mxu0 %v238
    %264 = vmatmul.f32.gmra.mxu0 %v246
    %v265 = vpop.f32.mrf.mxu0
    %v266 = vadd.f32 %v243, %v265
    %267 = vdwg.mxu0
    %v268 = vxor.u32 %v266, 2147483648
    %v269 = vmul.f32 %v268, 1.442695
    %v270 = vpow.pop %v269
    %v271 = vadd.f32 %v270, 1.0
    %v272 = vrcp.pop %v271
    %v273 = vmul.f32 %v271, %v272
    %v274 = vsub.f32 1.0, %v273
    %v275 = vmul.f32 %v272, %v274
    %v276 = vadd.f32 %v272, %v275
    %vm277 = vweird.f32 %v271
    %vm278 = vweird.f32 %v272
    %vm279 = vmor %vm277, %vm278
    %v280 = vsel %vm279, %v272, %v276
    %v281 = vand.u32 2147483647, %v271
    %vm282 = vcmp.eq.f32.partialorder %v281, 8.507059e+37
    %v283 = vand.u32 %v271, 2147483648
    %v284 = vor.u32 1.1754944e-38, %v283
    %v285 = vsel %vm282, %v284, %v280
    %v286 = vmul.f32 1.0, %v285
    %vm287 = vcmask 58368
    %288 = vst.msk [vmem:[#allocation7] sm:$0x3] %vm287, %v286
    // Predicated region
    $region18: #{tpu_custom_call.1} parent=1 // pred_check
      _
    $region19: #{tpu_custom_call.1} parent=1 // pred_check_branch
      %290 = sbr.rel (0) target = $region21
    $region20: #{tpu_custom_call.1} parent=1 // pred_region
      %292 = vsyncadd [#allocation4], 0
      %s294 = sshll.u32 [#allocation7], 4
      %s295 = int_to_ptr.vmem [resolvable:$true] %s294
      %s296 = sshll.u32 %s2, 4
      %s297 = int_to_ptr.hbm [resolvable:$true] %s296
      %299 = dma.vmem_to_hbm [thread:$0]  %s295, 32, %s297, [#allocation4]
    $region21: #{tpu_custom_call.1} parent=1 // pred_fallthru
      _
    // Predicated region
    $region22: #{tpu_custom_call.1} parent=1 // pred_check
      _
    $region23: #{tpu_custom_call.1} parent=1 // pred_check_branch
      %301 = sbr.rel (0) target = $region25
    $region24: #{tpu_custom_call.1} parent=1 // pred_region
      %303 = dma.done [#allocation4], 32
    $region25: #{tpu_custom_call.1} parent=1 // pred_fallthru
      _
    %304 = vsyncpa [#allocation3], 1
    %305 = vsyncpa [#allocation6], 1
    %306 = vsyncpa [#allocation4], 1

</llo_original>
